<compile_context>
chip_gen: v7x
topology: tpu7x:2x2x1
jax: 0.10.0
libtpu: 0.0.40
codegen_flags: <defaults>
</compile_context>

<pallas_src>
import jax
import jax.numpy as jnp
from jax.experimental import pallas as pl
from jax.experimental.pallas import tpu as pltpu

EPS = 1e-6


def _round_up(n, m):
    return ((n + m - 1) // m) * m


def _vmem_usable_bytes():
    """Per-generation usable VMEM budget (leaves headroom for compiler scratch)."""
    cap = 64 * 1024 * 1024  # v7x-safe fallback if the query is unavailable
    try:
        info = pltpu.get_tpu_info()
        cap = int(getattr(info, "vmem_capacity_bytes", cap)) or cap
    except Exception:
        pass
    # ~48 MiB on 64 MiB parts (v7x), ~96 MiB on 128 MiB parts (v5e/v6e).
    return max(32 * 1024 * 1024, min((cap * 3) // 4, cap - 16 * 1024 * 1024))


def _vmem_bytes(tm, d):
    """Exact kernel buffer bytes for row tile tm, feature dim d (conservative 2x bufs)."""
    x_tiles = 2 * tm * d * 4                    # input tile, f32, double-buffered
    o_tiles = 2 * tm * d * 4                    # output tile, f32, double-buffered
    w_blk = 2 * d * d * 2                       # folded weight, bf16 (count both buffers)
    b_blk = 2 * 8 * max(_round_up(d, 128), 128) * 4   # (1, d) bias padded to (8, 128k)
    return x_tiles + o_tiles + w_blk + b_blk


def _choose_tm(R, d, vmem_usable, requested=None):
    """Row tile: big enough to hide per-step overhead, small enough for VMEM + 2 steps."""
    if requested is None:
        # ~4 MiB of f32 input rows per step  ->  ~8 MiB in+out HBM traffic per step.
        requested = max(512, (4 * 1024 * 1024) // (d * 4))
    tm = _round_up(max(int(requested), 8), 8)
    # Guarantee >= 2 grid steps so v7x can shard row tiles across its two TensorCores.
    tm = min(tm, _round_up(pl.cdiv(R, 2), 8))
    tm = max(tm, 8)
    # Shrink until the buffers fit the usable VMEM budget (graceful, no silent clamp).
    while tm > 8 and _vmem_bytes(tm, d) > vmem_usable:
        tm = max(8, _round_up(tm // 2, 8))
    return tm


def sublayer_residual_kernel(x_ref, w_ref, b_ref, o_ref):
    """One (TM, D) row tile: out = x + (LayerNorm(x) @ W_eff + b_eff).

    The LayerNorm affine is pre-folded into W_eff / b_eff on the host. Mean is an exact
    f32 XLU reduction; the (centered) sum-of-squares reduction is pushed to the MXU via
    a ones-matmul so the XLU is not the binding slot at small D. VPU math stays f32.
    """
    x = x_ref[...].astype(jnp.float32)                       # (TM, D)
    d = x.shape[-1]

    # Exact f32 mean (single XLU cross-lane reduction).
    mean = jnp.sum(x, axis=-1, keepdims=True) * (1.0 / d)
    xc = x - mean                                            # centered, two-pass form

    # Sum of squares on the (otherwise idle) MXU: squares are non-negative, so the bf16
    # operand quantization is a ~0.2% relative error -- far inside tolerance -- and the
    # accumulation is f32. All 128 output lanes hold the same sum; keep lane 0.
    sq = (xc * xc).astype(jnp.bfloat16)
    ones = jnp.ones((d, 128), dtype=jnp.bfloat16)
    ssq = jnp.dot(sq, ones, preferred_element_type=jnp.float32)[:, :1]   # (TM, 1)

    # torch.Tensor.std() semantics: UNBIASED variance (/(d-1)); eps added to std.
    std = jnp.sqrt(jnp.maximum(ssq, 0.0) * (1.0 / (d - 1)))
    inv = pl.reciprocal(std + EPS, approx=True)              # EUP slot, frees VALU
    xhat = xc * inv                                          # f32

    # Sublayer Linear on the MXU: bf16 operands, f32 accumulation.
    sub = jnp.dot(xhat.astype(jnp.bfloat16), w_ref[...],
                  preferred_element_type=jnp.float32)
    sub = sub + b_ref[...]

    # dropout(p=0.0) is identity; residual add in f32.
    o_ref[...] = (x + sub).astype(o_ref.dtype)


def sublayer_connection(x, a2, b2, w, bw, *, tm=None):
    """x: (B, T, D) float32. Returns x + Linear(LayerNorm(x)) (torch-matching norm).

    tm=None picks a generation-aware row tile (large, VMEM-budgeted, >= 2 grid steps).
    The ragged last row tile is handled by Pallas cdiv-grid edge masking; no host pad.
    """
    B, T, D = x.shape
    R = B * T

    # Fold the LayerNorm affine into the sublayer Linear (host-side, one-time,
    # on the (D, D) parameters only):
    #   (a2 * xhat + b2) @ W + bw == xhat @ (a2[:, None] * W) + (b2 @ W + bw)
    w32 = w.astype(jnp.float32)
    w_eff = (a2.astype(jnp.float32)[:, None] * w32).astype(jnp.bfloat16)   # bf16 MXU weight
    b_eff = (b2.astype(jnp.float32) @ w32 + bw.astype(jnp.float32)).reshape(1, D)

    usable = _vmem_usable_bytes()
    tm = _choose_tm(R, D, usable, requested=tm)
    grid = (pl.cdiv(R, tm),)

    required = _vmem_bytes(tm, D)
    vmem_limit = int(min(usable, max(required + 8 * 1024 * 1024, 32 * 1024 * 1024)))

    x2 = x.reshape(R, D)   # reshape only -- no pad; tail rows masked by Pallas

    out = pl.pallas_call(
        sublayer_residual_kernel,
        out_shape=jax.ShapeDtypeStruct((R, D), x.dtype),
        grid_spec=pltpu.PrefetchScalarGridSpec(
            num_scalar_prefetch=0,
            grid=grid,
            in_specs=[
                pl.BlockSpec((tm, D), lambda i: (i, 0)),   # x row tile (ragged tail OK)
                # Constant-index blocks: fetched once and kept resident.
                pl.BlockSpec((D, D), lambda i: (0, 0)),    # folded weight (bf16)
                pl.BlockSpec((1, D), lambda i: (0, 0)),    # folded bias (f32)
            ],
            out_specs=pl.BlockSpec((tm, D), lambda i: (i, 0)),
        ),
        compiler_params=pltpu.CompilerParams(
            # "parallel" lets v7x shard row tiles across its two TensorCores; the tm
            # cap guarantees >= 2 grid steps so both cores get work.
            dimension_semantics=("parallel",),
            vmem_limit_bytes=vmem_limit,
        ),
    )(x2, w_eff, b_eff)

    return out.reshape(B, T, D)


def reference(x, a2, b2, w, bw):
    """Pure-JAX f32 reference mirroring the PyTorch forward."""
    d = x.shape[-1]
    mean = jnp.mean(x, axis=-1, keepdims=True)
    xc = x - mean
    std = jnp.sqrt(jnp.sum(xc * xc, axis=-1, keepdims=True) / (d - 1))
    normed = a2 * xc / (std + EPS) + b2
    return x + (jnp.einsum("btd,de->bte", normed, w) + bw)


if __name__ == "__main__":
    key = jax.random.PRNGKey(0)
    # Small shape consistent with one SwinMLP stage: B=2, T=14*14=196 tokens,
    # lane-aligned feature dim D=128.
    B, T, D = 2, 196, 128
    kx, ka, kb2, kw, kb = jax.random.split(key, 5)
    x = jax.random.normal(kx, (B, T, D), dtype=jnp.float32)

    # Non-trivial LayerNorm affine so the host-side fold is actually exercised.
    a2 = 1.0 + 0.1 * jax.random.normal(ka, (D,), dtype=jnp.float32)
    b2 = 0.05 * jax.random.normal(kb2, (D,), dtype=jnp.float32)

    # Deterministic synthetic sublayer (Linear D->D), trunc_normal-like scale.
    w = jax.random.normal(kw, (D, D), dtype=jnp.float32) * 0.02
    bw = jax.random.normal(kb, (D,), dtype=jnp.float32) * 0.02

    ref = reference(x, a2, b2, w, bw)

    # Path 1: default (generation-aware) tile -> capped to cdiv(R,2)=200 rows,
    #         2 grid steps, ragged last tile (192 of 200 rows valid).
    out1 = jax.block_until_ready(sublayer_connection(x, a2, b2, w, bw))
    # Path 2: explicit smaller tile -> 4 grid steps, ragged last tile (8 of 128 valid);
    #         asserts that edge masking confines garbage tail rows.
    out2 = jax.block_until_ready(sublayer_connection(x, a2, b2, w, bw, tm=128))

    assert out1.shape == (B, T, D) and out2.shape == (B, T, D)
    # Tolerances loosened vs the pure-f32 reference because of bf16 MXU operands and
    # the approximate EUP reciprocal (expected error ~1e-3).
    assert jnp.allclose(out1, ref, atol=3e-2, rtol=3e-2), float(jnp.max(jnp.abs(out1 - ref)))
    assert jnp.allclose(out2, ref, atol=3e-2, rtol=3e-2), float(jnp.max(jnp.abs(out2 - ref)))
    assert bool(jnp.all(jnp.isfinite(out1))) and bool(jnp.all(jnp.isfinite(out2)))

    print("KERNEL_OK")
</pallas_src>

<mosaic_0001>
module attributes {stable_mosaic.version = 11 : i64} {
  func.func @sublayer_residual_kernel(%arg0: i32, %arg1: memref<200x128xf32, #tpu.memory_space<vmem>>, %arg2: memref<128x128xbf16, #tpu.memory_space<vmem>>, %arg3: memref<1x128xf32, #tpu.memory_space<vmem>>, %arg4: memref<200x128xf32, #tpu.memory_space<vmem>>) attributes {dimension_semantics = [#tpu.dimension_semantics<parallel>], iteration_bounds = array<i64: 2>, scalar_prefetch = 0 : i64, scratch_operands = 0 : i64, tpu.core_type = #tpu.core_type<tc>, window_params = [{transform_indices = @transform_0, window_bounds = array<i64: 200, 128>}, {pipeline_mode = #tpu.pipeline_mode<synchronous>, transform_indices = @transform_1, window_bounds = array<i64: 128, 128>}, {pipeline_mode = #tpu.pipeline_mode<synchronous>, transform_indices = @transform_2, window_bounds = array<i64: 1, 128>}, {transform_indices = @transform_3, window_bounds = array<i64: 200, 128>}]} {
    %c0 = arith.constant 0 : index
    %c0_0 = arith.constant 0 : index
    %0 = vector.load %arg1[%c0, %c0_0] : memref<200x128xf32, #tpu.memory_space<vmem>>, vector<200x128xf32>
    %cst = arith.constant dense<0.000000e+00> : vector<200xf32>
    %1 = vector.multi_reduction <add>, %0, %cst [1] : vector<200x128xf32> to vector<200xf32>
    %2 = vector.shape_cast %1 : vector<200xf32> to vector<200x1xf32>
    %cst_1 = arith.constant 7.812500e-03 : f32
    %3 = vector.broadcast %cst_1 : f32 to vector<200x1xf32>
    %4 = arith.mulf %2, %3 : vector<200x1xf32>
    %5 = vector.broadcast %4 : vector<200x1xf32> to vector<200x128xf32>
    %6 = arith.subf %0, %5 : vector<200x128xf32>
    %7 = arith.mulf %6, %6 : vector<200x128xf32>
    %8 = arith.truncf %7 : vector<200x128xf32> to vector<200x128xbf16>
    %cst_2 = arith.constant 1.000000e+00 : bf16
    %9 = vector.broadcast %cst_2 : bf16 to vector<128x128xbf16>
    %cst_3 = arith.constant dense<0.000000e+00> : vector<200x128xf32>
    %10 = tpu.matmul %8, %9, %cst_3 {dimension_numbers = #tpu.dot_dimension_numbers<[1], [0], [0], [1], [0, 0, 1, 1], [], []>} : vector<200x128xbf16>, vector<128x128xbf16>, vector<200x128xf32> -> vector<200x128xf32>
    %11 = vector.extract_strided_slice %10 {offsets = [0, 0], sizes = [200, 1], strides = [1, 1]} : vector<200x128xf32> to vector<200x1xf32>
    %cst_4 = arith.constant 0.000000e+00 : f32
    %12 = vector.broadcast %cst_4 : f32 to vector<200x1xf32>
    %13 = arith.maximumf %11, %12 : vector<200x1xf32>
    %cst_5 = arith.constant 0.00787401571 : f32
    %14 = vector.broadcast %cst_5 : f32 to vector<200x1xf32>
    %15 = arith.mulf %13, %14 : vector<200x1xf32>
    %16 = math.sqrt %15 : vector<200x1xf32>
    %cst_6 = arith.constant 9.99999997E-7 : f32
    %17 = vector.broadcast %cst_6 : f32 to vector<200x1xf32>
    %18 = arith.addf %16, %17 : vector<200x1xf32>
    %19 = tpu.reciprocal %18 {approx = true} : vector<200x1xf32> -> vector<200x1xf32>
    %20 = vector.broadcast %19 : vector<200x1xf32> to vector<200x128xf32>
    %21 = arith.mulf %6, %20 : vector<200x128xf32>
    %22 = arith.truncf %21 : vector<200x128xf32> to vector<200x128xbf16>
    %c0_7 = arith.constant 0 : index
    %c0_8 = arith.constant 0 : index
    %23 = vector.load %arg2[%c0_7, %c0_8] : memref<128x128xbf16, #tpu.memory_space<vmem>>, vector<128x128xbf16>
    %cst_9 = arith.constant dense<0.000000e+00> : vector<200x128xf32>
    %24 = tpu.matmul %22, %23, %cst_9 {dimension_numbers = #tpu.dot_dimension_numbers<[1], [0], [0], [1], [0, 0, 1, 1], [], []>} : vector<200x128xbf16>, vector<128x128xbf16>, vector<200x128xf32> -> vector<200x128xf32>
    %c0_10 = arith.constant 0 : index
    %c0_11 = arith.constant 0 : index
    %25 = vector.load %arg3[%c0_10, %c0_11] : memref<1x128xf32, #tpu.memory_space<vmem>>, vector<1x128xf32>
    %26 = vector.broadcast %25 : vector<1x128xf32> to vector<200x128xf32>
    %27 = arith.addf %24, %26 : vector<200x128xf32>
    %28 = arith.addf %0, %27 : vector<200x128xf32>
    %c0_12 = arith.constant 0 : index
    %c0_13 = arith.constant 0 : index
    %29 = vector.load %arg4[%c0_12, %c0_13] : memref<200x128xf32, #tpu.memory_space<vmem>>, vector<200x128xf32>
    tpu.vector_store %arg4[%c0_12, %c0_13], %28 {strides = array<i32>} : memref<200x128xf32, #tpu.memory_space<vmem>>, vector<200x128xf32>,
    return
  }
  func.func @transform_0(%arg0: i32) -> (i32, i32) {
    %c0_i32 = arith.constant 0 : i32
    %c0_i32_0 = arith.constant 0 : i32
    return %arg0, %c0_i32 : i32, i32
  }
  func.func @transform_1(%arg0: i32) -> (i32, i32) {
    %c0_i32 = arith.constant 0 : i32
    %c0_i32_0 = arith.constant 0 : i32
    %c0_i32_1 = arith.constant 0 : i32
    return %c0_i32, %c0_i32_0 : i32, i32
  }
  func.func @transform_2(%arg0: i32) -> (i32, i32) {
    %c0_i32 = arith.constant 0 : i32
    %c0_i32_0 = arith.constant 0 : i32
    %c0_i32_1 = arith.constant 0 : i32
    return %c0_i32, %c0_i32_0 : i32, i32
  }
  func.func @transform_3(%arg0: i32) -> (i32, i32) {
    %c0_i32 = arith.constant 0 : i32
    %c0_i32_0 = arith.constant 0 : i32
    return %arg0, %c0_i32 : i32, i32
  }
}

</mosaic_0001>

<llo_original>
// kernel: tpu_custom_call.1
$region0: #{tpu_custom_call.1}
  #allocation0 [shape = 'u32[]', space=smem, size = 0x4, offset = 0x4, fixed_abs, tag = 'smem constant byte address 0x4 - core index']
  #allocation1 [shape = 'u32[144,128]{1,0:T(1,128)}', space=vmem, size = 0x12000, scoped, tag = 'internal scratch']
  %s0 = inlined_call_operand.hbm [shape: f32[392,128], index: 0, kind: input, shape index: {}]
  %s1 = inlined_call_operand.hbm [shape: bf16[128,128], index: 1, kind: input, shape index: {}]
  %s2 = inlined_call_operand.vmem [shape: f32[1,128], index: 2, kind: input, shape index: {}]
  %s3 = inlined_call_operand.hbm [shape: f32[392,128], index: 3, kind: output, shape index: {}]
  %s4 = sld [smem:[#allocation0]]
  $region53: #{tpu_custom_call.1} parent=0
    _
  %s6 = ssub.s32 1, %s4
  %s7 = scalar_select 0, %s6, %s4
  $region1: #{tpu_custom_call.1} parent=0
    #allocation2 [shape = 'u8[204800]{0}', space=vmem, size = 0x32000, scoped, tag = 'input window, operand 0']
    #allocation3 [shape = 's32[2]{0}', space=sflag, size = 0x8, scoped, tag = 'scoped memory for tpu_custom_call.1']
    #allocation4 [shape = 's32[2]{0}', space=sflag, size = 0x8, scoped, tag = 'scoped memory for tpu_custom_call.1']
    #allocation5 [shape = 'u8[32768]{0}', space=vmem, size = 0x8000, scoped, tag = 'input window, operand 1, single buffered']
    #allocation6 [shape = 's32[1]{0}', space=sflag, size = 0x4, scoped, tag = 'scoped memory for tpu_custom_call.1']
    #allocation7 [shape = 'u8[204800]{0}', space=vmem, size = 0x32000, scoped, tag = 'output window, operand 0']
    %8 = vsyncpa [#allocation3], 0
    %s9 = scalar_lea.sflag [#allocation3], 1
    %10 = vsyncpa %s9, 0
    %11 = vsyncpa [#allocation6], 0
    %12 = vsyncpa [#allocation4], 0
    %s13 = scalar_lea.sflag [#allocation4], 1
    %14 = vsyncpa %s13, 0
    loop: start=0, step=1, limit=4
    $region2: #{tpu_custom_call.1} parent=1 // loop_pre_header
      _
    $region3: #{tpu_custom_call.1} parent=1 // loop_header
      %s16 = sphi 0, %s20
      %p17 = scmp.ge.s32.totalorder %s16, 4
      %s26 = sphi 0, %s28
      %s29 = sphi 0, %s26
      %s30 = sphi 0, %s29
      %s46 = sphi 0, %s30
      %s50 = sphi 0, %s50
      %s52 = sphi 0, %s50
      %s53 = sphi 0, %s52
      %s67 = sphi 0, %s53
      %s71 = sphi 0, %s71
      %s73 = sphi 0, %s71
      %s74 = sphi 0, %s73
      %s88 = sphi 0, %s74
      %s94 = sphi 0, %s96
      %s97 = sphi 0, %s94
      %s98 = sphi 0, %s97
      %s114 = sphi 0, %s98
    $region4: #{tpu_custom_call.1} parent=1 // loop_header_branch
      %19 = sbr.rel (%p17) target = $region8
    $region5: #{tpu_custom_call.1} parent=1 // loop_body
      %s21 = ssub.s32 %s16, 1
      %s22 = ssub.s32 %s16, 2
      %s23 = sadd.s32 %s16, 1
      %s24 = ssub.s32 %s16, %s23
      %p25 = scmp.eq.s32.totalorder %s24, 0
      %s27 = sadd.s32 %s26, 1
      %s28 = scalar_select %p25, %s26, %s27
      %p31 = pneg %p25
      %p32 = scmp.eq.s32.totalorder %s16, 1
      %p33 = por %p31, %p32
      %p34 = scmp.ne.s32.totalorder %s26, %s29
      %p35 = scmp.eq.s32.totalorder %s16, 0
      %p36 = por %p34, %p35
      %p37 = scmp.ne.s32.totalorder %s26, %s29
      %p38 = scmp.eq.s32.totalorder %s21, 1
      %p39 = por %p37, %p38
      %p40 = scmp.ne.s32.totalorder %s29, %s30
      %p41 = scmp.eq.s32.totalorder %s21, 0
      %p42 = por %p40, %p41
      %p43 = scmp.ne.s32.totalorder %s29, %s30
      %p44 = scmp.eq.s32.totalorder %s22, 1
      %p45 = por %p43, %p44
      %p47 = scmp.ne.s32.totalorder %s30, %s46
      %p48 = scmp.eq.s32.totalorder %s22, 0
      %p49 = por %p47, %p48
      %s51 = sadd.s32 %s50, 1
      %p54 = scmp.eq.s32.totalorder %s16, 1
      %p55 = scmp.ne.s32.totalorder %s50, %s52
      %p56 = scmp.eq.s32.totalorder %s16, 0
      %p57 = por %p55, %p56
      %p58 = scmp.ne.s32.totalorder %s50, %s52
      %p59 = scmp.eq.s32.totalorder %s21, 1
      %p60 = por %p58, %p59
      %p61 = scmp.ne.s32.totalorder %s52, %s53
      %p62 = scmp.eq.s32.totalorder %s21, 0
      %p63 = por %p61, %p62
      %p64 = scmp.ne.s32.totalorder %s52, %s53
      %p65 = scmp.eq.s32.totalorder %s22, 1
      %p66 = por %p64, %p65
      %p68 = scmp.ne.s32.totalorder %s53, %s67
      %p69 = scmp.eq.s32.totalorder %s22, 0
      %p70 = por %p68, %p69
      %s72 = sadd.s32 %s71, 1
      %p75 = scmp.eq.s32.totalorder %s16, 1
      %p76 = scmp.ne.s32.totalorder %s71, %s73
      %p77 = scmp.eq.s32.totalorder %s16, 0
      %p78 = por %p76, %p77
      %p79 = scmp.ne.s32.totalorder %s71, %s73
      %p80 = scmp.eq.s32.totalorder %s21, 1
      %p81 = por %p79, %p80
      %p82 = scmp.ne.s32.totalorder %s73, %s74
      %p83 = scmp.eq.s32.totalorder %s21, 0
      %p84 = por %p82, %p83
      %p85 = scmp.ne.s32.totalorder %s73, %s74
      %p86 = scmp.eq.s32.totalorder %s22, 1
      %p87 = por %p85, %p86
      %p89 = scmp.ne.s32.totalorder %s74, %s88
      %p90 = scmp.eq.s32.totalorder %s22, 0
      %p91 = por %p89, %p90
      %s92 = ssub.s32 %s16, %s23
      %p93 = scmp.eq.s32.totalorder %s92, 0
      %s95 = sadd.s32 %s94, 1
      %s96 = scalar_select %p93, %s94, %s95
      %p99 = pneg %p93
      %p100 = scmp.eq.s32.totalorder %s16, 1
      %p101 = por %p99, %p100
      %p102 = scmp.ne.s32.totalorder %s94, %s97
      %p103 = scmp.eq.s32.totalorder %s16, 0
      %p104 = por %p102, %p103
      %p105 = scmp.ne.s32.totalorder %s94, %s97
      %p106 = scmp.eq.s32.totalorder %s21, 1
      %p107 = por %p105, %p106
      %p108 = scmp.ne.s32.totalorder %s97, %s98
      %p109 = scmp.eq.s32.totalorder %s21, 0
      %p110 = por %p108, %p109
      %p111 = scmp.ne.s32.totalorder %s97, %s98
      %p112 = scmp.eq.s32.totalorder %s22, 1
      %p113 = por %p111, %p112
      %p115 = scmp.ne.s32.totalorder %s98, %s114
      %p116 = scmp.eq.s32.totalorder %s22, 0
      %p117 = por %p115, %p116
      %p118 = scmp.le.s32.totalorder 1, %s16
      %p119 = scmp.lt.s32.totalorder %s16, 3
      %p120 = pnand %p118, %p119
      %p121 = pneg %p120
      // Predicated region
      $region9: #{tpu_custom_call.1} parent=5 // pred_check
        _
      $region10: #{tpu_custom_call.1} parent=5 // pred_check_branch
        %123 = sbr.rel (%p120) target = $region12
      $region11: #{tpu_custom_call.1} parent=5 // pred_region
        %s124 = ssub.s32 %s16, 1
        // Predicated region
        $region13: #{tpu_custom_call.1} parent=11 // pred_check
          %p125 = pneg %p63
        $region14: #{tpu_custom_call.1} parent=11 // pred_check_branch
          %127 = sbr.rel (%p125) target = $region16
        $region15: #{tpu_custom_call.1} parent=11 // pred_region
          %s129 = ssub.s32 1024, 1024
          %130 = vsyncadd [#allocation6], %s129
          %s131 = sshll.u32 [#allocation5], 4
          %s132 = int_to_ptr.vmem [resolvable:$true] %s131
          %137 = dma.hbm_to_vmem [thread:$0]  %s1, 1024, %s132, [#allocation6], 64, 64, 4
        $region16: #{tpu_custom_call.1} parent=11 // pred_fallthru
          _
        // Predicated region
        $region17: #{tpu_custom_call.1} parent=11 // pred_check
          %p138 = pneg %p84
        $region18: #{tpu_custom_call.1} parent=11 // pred_check_branch
          %140 = sbr.rel (%p138) target = $region20
        $region19: #{tpu_custom_call.1} parent=11 // pred_region
          _
        $region20: #{tpu_custom_call.1} parent=11 // pred_fallthru
          _
      $region12: #{tpu_custom_call.1} parent=5 // pred_fallthru
        _
      %p141 = scmp.lt.s32.totalorder %s16, 2
      // Predicated region
      $region21: #{tpu_custom_call.1} parent=5 // pred_check
        %p142 = pneg %p141
      $region22: #{tpu_custom_call.1} parent=5 // pred_check_branch
        %144 = sbr.rel (%p142) target = $region24
      $region23: #{tpu_custom_call.1} parent=5 // pred_region
        // Predicated region
        $region25: #{tpu_custom_call.1} parent=23 // pred_check
          %p145 = pneg %p36
        $region26: #{tpu_custom_call.1} parent=23 // pred_check_branch
          %147 = sbr.rel (%p145) target = $region28
        $region27: #{tpu_custom_call.1} parent=23 // pred_region
          %s148 = sand.u32 %s26, 1
          %s149 = scalar_lea.sflag [#allocation3], %s148
          %s150 = sand.u32 %s26, 1
          %s151 = smul.addr %s150, 200
          %s152 = scalar_lea.vmem [#allocation2], %s151
          %s153 = smul.u32 25, %s16
          %s154 = ssub.s32 49, %s153
          %p155 = scmp.lt.s32.totalorder %s154, 25
          %s156 = scalar_select %p155, %s154, 25
          %s157 = smul.u32 128, %s156
          %s159 = ssub.s32 3200, %s157
          %160 = vsyncadd %s149, %s159
          %p161 = scmp.ne.s32.totalorder 0, %s157
          %s162 = smul.addr %s153, 128
          %s163 = scalar_lea.hbm %s0, %s162
          %s164 = smul.u32 8, %s156
          %s165 = sshll.u32 %s152, 4
          %s166 = int_to_ptr.vmem [resolvable:$true] %s165
          %s167 = sshll.u32 %s164, 4
          %171 = dma.hbm_to_vmem [thread:$0]  (%p161), %s163, %s167, %s166, %s149, 128, 128, 8
        $region28: #{tpu_custom_call.1} parent=23 // pred_fallthru
          _
      $region24: #{tpu_custom_call.1} parent=5 // pred_fallthru
        _
      %p172 = scmp.le.s32.totalorder 1, %s16
      %p173 = scmp.lt.s32.totalorder %s16, 3
      %p174 = pnand %p172, %p173
      %p175 = pneg %p174
      // Predicated region
      $region29: #{tpu_custom_call.1} parent=5 // pred_check
        _
      $region30: #{tpu_custom_call.1} parent=5 // pred_check_branch
        %177 = sbr.rel (%p174) target = $region32
      $region31: #{tpu_custom_call.1} parent=5 // pred_region
        %s178 = ssub.s32 %s16, 1
        %s179 = sand.u32 %s29, 1
        %s180 = scalar_lea.sflag [#allocation3], %s179
        %s181 = sand.u32 %s29, 1
        %s182 = smul.addr %s181, 200
        %s183 = scalar_lea.vmem [#allocation2], %s182
        // Predicated region
        $region33: #{tpu_custom_call.1} parent=31 // pred_check
          %p184 = pneg %p42
        $region34: #{tpu_custom_call.1} parent=31 // pred_check_branch
          %186 = sbr.rel (%p184) target = $region36
        $region35: #{tpu_custom_call.1} parent=31 // pred_region
          %187 = dma.done %s180, 3200
        $region36: #{tpu_custom_call.1} parent=31 // pred_fallthru
          _
        // Predicated region
        $region37: #{tpu_custom_call.1} parent=31 // pred_check
          %p188 = pneg %p63
        $region38: #{tpu_custom_call.1} parent=31 // pred_check_branch
          %190 = sbr.rel (%p188) target = $region40
        $region39: #{tpu_custom_call.1} parent=31 // pred_region
          %191 = dma.done [#allocation6], 1024
        $region40: #{tpu_custom_call.1} parent=31 // pred_fallthru
          _
        %s192 = sand.u32 %s29, 1
        %s193 = scalar_lea.sflag [#allocation3], %s192
        %s194 = sand.u32 %s29, 1
        %s195 = smul.addr %s194, 200
        %s196 = scalar_lea.vmem [#allocation2], %s195
        %p197 = pneg %p42
        %p198 = pneg %p39
        %p199 = pneg %p63
        %p200 = pneg %p60
        %p201 = pneg %p84
        %p202 = pneg %p81
        %p203 = pneg %p110
        %p204 = pneg %p107
        %s205 = sand.u32 %s97, 1
        %s206 = scalar_lea.sflag [#allocation4], %s205
        %s207 = sand.u32 %s97, 1
        %s208 = smul.addr %s207, 200
        %s209 = scalar_lea.vmem [#allocation7], %s208
        %s210 = smul.u32 25, %s21
        %s211 = ssub.s32 49, %s210
        %p212 = scmp.lt.s32.totalorder %s211, 25
        %s213 = scalar_select %p212, %s211, 25
        %s214 = smul.u32 128, %s213
        %s215 = smul.u32 25, %s21
        %s216 = ssub.s32 49, %s215
        %p217 = scmp.lt.s32.totalorder %s216, 25
        %s218 = scalar_select %p217, %s216, 25
        %s219 = smul.u32 128, %s218
        %v222 = vld [vmem:[%s183] sm:$0xff]
        %v223 = vld [vmem:[%s183 + $0x8] sm:$0xff]
        %v224 = vld [vmem:[%s183 + $0x10] sm:$0xff]
        %v225 = vld [vmem:[%s183 + $0x18] sm:$0xff]
        %v226 = vld [vmem:[%s183 + $0x20] sm:$0xff]
        %v227 = vld [vmem:[%s183 + $0x28] sm:$0xff]
        %v228 = vld [vmem:[%s183 + $0x30] sm:$0xff]
        %v229 = vld [vmem:[%s183 + $0x38] sm:$0xff]
        %v230 = vld [vmem:[%s183 + $0x40] sm:$0xff]
        %v231 = vld [vmem:[%s183 + $0x48] sm:$0xff]
        %v232 = vld [vmem:[%s183 + $0x50] sm:$0xff]
        %v233 = vld [vmem:[%s183 + $0x58] sm:$0xff]
        %v234 = vld [vmem:[%s183 + $0x60] sm:$0xff]
        %v235 = vld [vmem:[%s183 + $0x68] sm:$0xff]
        %v236 = vld [vmem:[%s183 + $0x70] sm:$0xff]
        %v237 = vld [vmem:[%s183 + $0x78] sm:$0xff]
        %v238 = vld [vmem:[%s183 + $0x80] sm:$0xff]
        %v239 = vld [vmem:[%s183 + $0x88] sm:$0xff]
        %v240 = vld [vmem:[%s183 + $0x90] sm:$0xff]
        %v241 = vld [vmem:[%s183 + $0x98] sm:$0xff]
        %v242 = vld [vmem:[%s183 + $0xa0] sm:$0xff]
        %v243 = vld [vmem:[%s183 + $0xa8] sm:$0xff]
        %v244 = vld [vmem:[%s183 + $0xb0] sm:$0xff]
        %v245 = vld [vmem:[%s183 + $0xb8] sm:$0xff]
        %v246 = vld [vmem:[%s183 + $0xc0] sm:$0xff]
        %247 = vadd.xlane.f32.xlu0 %v222
        %v248 = vpop.xlane.xlu0 %247
        %249 = vadd.xlane.f32.xlu0 %v223
        %v250 = vpop.xlane.xlu0 %249
        %251 = vadd.xlane.f32.xlu0 %v224
        %v252 = vpop.xlane.xlu0 %251
        %253 = vadd.xlane.f32.xlu0 %v225
        %v254 = vpop.xlane.xlu0 %253
        %255 = vadd.xlane.f32.xlu0 %v226
        %v256 = vpop.xlane.xlu0 %255
        %257 = vadd.xlane.f32.xlu0 %v227
        %v258 = vpop.xlane.xlu0 %257
        %259 = vadd.xlane.f32.xlu0 %v228
        %v260 = vpop.xlane.xlu0 %259
        %261 = vadd.xlane.f32.xlu0 %v229
        %v262 = vpop.xlane.xlu0 %261
        %263 = vadd.xlane.f32.xlu0 %v230
        %v264 = vpop.xlane.xlu0 %263
        %265 = vadd.xlane.f32.xlu0 %v231
        %v266 = vpop.xlane.xlu0 %265
        %267 = vadd.xlane.f32.xlu0 %v232
        %v268 = vpop.xlane.xlu0 %267
        %269 = vadd.xlane.f32.xlu0 %v233
        %v270 = vpop.xlane.xlu0 %269
        %271 = vadd.xlane.f32.xlu0 %v234
        %v272 = vpop.xlane.xlu0 %271
        %273 = vadd.xlane.f32.xlu0 %v235
        %v274 = vpop.xlane.xlu0 %273
        %275 = vadd.xlane.f32.xlu0 %v236
        %v276 = vpop.xlane.xlu0 %275
        %277 = vadd.xlane.f32.xlu0 %v237
        %v278 = vpop.xlane.xlu0 %277
        %279 = vadd.xlane.f32.xlu0 %v238
        %v280 = vpop.xlane.xlu0 %279
        %281 = vadd.xlane.f32.xlu0 %v239
        %v282 = vpop.xlane.xlu0 %281
        %283 = vadd.xlane.f32.xlu0 %v240
        %v284 = vpop.xlane.xlu0 %283
        %285 = vadd.xlane.f32.xlu0 %v241
        %v286 = vpop.xlane.xlu0 %285
        %287 = vadd.xlane.f32.xlu0 %v242
        %v288 = vpop.xlane.xlu0 %287
        %289 = vadd.xlane.f32.xlu0 %v243
        %v290 = vpop.xlane.xlu0 %289
        %291 = vadd.xlane.f32.xlu0 %v244
        %v292 = vpop.xlane.xlu0 %291
        %293 = vadd.xlane.f32.xlu0 %v245
        %v294 = vpop.xlane.xlu0 %293
        %295 = vadd.xlane.f32.xlu0 %v246
        %v296 = vpop.xlane.xlu0 %295
        %v297 = vmul.f32 %v248, 0.0078125
        %v298 = vmul.f32 %v250, 0.0078125
        %v299 = vmul.f32 %v252, 0.0078125
        %v300 = vmul.f32 %v254, 0.0078125
        %v301 = vmul.f32 %v256, 0.0078125
        %v302 = vmul.f32 %v258, 0.0078125
        %v303 = vmul.f32 %v260, 0.0078125
        %v304 = vmul.f32 %v262, 0.0078125
        %v305 = vmul.f32 %v264, 0.0078125
        %v306 = vmul.f32 %v266, 0.0078125
        %v307 = vmul.f32 %v268, 0.0078125
        %v308 = vmul.f32 %v270, 0.0078125
        %v309 = vmul.f32 %v272, 0.0078125
        %v310 = vmul.f32 %v274, 0.0078125
        %v311 = vmul.f32 %v276, 0.0078125
        %v312 = vmul.f32 %v278, 0.0078125
        %v313 = vmul.f32 %v280, 0.0078125
        %v314 = vmul.f32 %v282, 0.0078125
        %v315 = vmul.f32 %v284, 0.0078125
        %v316 = vmul.f32 %v286, 0.0078125
        %v317 = vmul.f32 %v288, 0.0078125
        %v318 = vmul.f32 %v290, 0.0078125
        %v319 = vmul.f32 %v292, 0.0078125
        %v320 = vmul.f32 %v294, 0.0078125
        %v321 = vmul.f32 %v296, 0.0078125
        %v322 = vsub.f32 %v222, %v297
        %v323 = vsub.f32 %v223, %v298
        %v324 = vsub.f32 %v224, %v299
        %v325 = vsub.f32 %v225, %v300
        %v326 = vsub.f32 %v226, %v301
        %v327 = vsub.f32 %v227, %v302
        %v328 = vsub.f32 %v228, %v303
        %v329 = vsub.f32 %v229, %v304
        %v330 = vsub.f32 %v230, %v305
        %v331 = vsub.f32 %v231, %v306
        %v332 = vsub.f32 %v232, %v307
        %v333 = vsub.f32 %v233, %v308
        %v334 = vsub.f32 %v234, %v309
        %v335 = vsub.f32 %v235, %v310
        %v336 = vsub.f32 %v236, %v311
        %v337 = vsub.f32 %v237, %v312
        %v338 = vsub.f32 %v238, %v313
        %v339 = vsub.f32 %v239, %v314
        %v340 = vsub.f32 %v240, %v315
        %v341 = vsub.f32 %v241, %v316
        %v342 = vsub.f32 %v242, %v317
        %v343 = vsub.f32 %v243, %v318
        %v344 = vsub.f32 %v244, %v319
        %v345 = vsub.f32 %v245, %v320
        %v346 = vsub.f32 %v246, %v321
        %v347 = vmul.f32 %v322, %v322
        %v348 = vmul.f32 %v323, %v323
        %v349 = vmul.f32 %v324, %v324
        %v350 = vmul.f32 %v325, %v325
        %v351 = vmul.f32 %v326, %v326
        %v352 = vmul.f32 %v327, %v327
        %v353 = vmul.f32 %v328, %v328
        %v354 = vmul.f32 %v329, %v329
        %v355 = vmul.f32 %v330, %v330
        %v356 = vmul.f32 %v331, %v331
        %v357 = vmul.f32 %v332, %v332
        %v358 = vmul.f32 %v333, %v333
        %v359 = vmul.f32 %v334, %v334
        %v360 = vmul.f32 %v335, %v335
        %v361 = vmul.f32 %v336, %v336
        %v362 = vmul.f32 %v337, %v337
        %v363 = vmul.f32 %v338, %v338
        %v364 = vmul.f32 %v339, %v339
        %v365 = vmul.f32 %v340, %v340
        %v366 = vmul.f32 %v341, %v341
        %v367 = vmul.f32 %v342, %v342
        %v368 = vmul.f32 %v343, %v343
        %v369 = vmul.f32 %v344, %v344
        %v370 = vmul.f32 %v345, %v345
        %v371 = vmul.f32 %v346, %v346
        %v372 = vpack.c.bf16 %v348, %v347
        %v373 = vpack.c.bf16 %v350, %v349
        %v374 = vpack.c.bf16 %v352, %v351
        %v375 = vpack.c.bf16 %v354, %v353
        %v376 = vpack.c.bf16 %v356, %v355
        %v377 = vpack.c.bf16 %v358, %v357
        %v378 = vpack.c.bf16 %v360, %v359
        %v379 = vpack.c.bf16 %v362, %v361
        %v380 = vpack.c.bf16 %v364, %v363
        %v381 = vpack.c.bf16 %v366, %v365
        %v382 = vpack.c.bf16 %v368, %v367
        %v383 = vpack.c.bf16 %v370, %v369
        %v384 = vpack.c.bf16 %v371, %v371
        %385 = vmatprep.subr.bf16.mxu0 0
        %386 = vmatpush1.bf16.msra.mxu0 1065369472
        %387 = vmatprep.subr.bf16.mxu0 0
        %388 = vmatpush1.bf16.msra.mxu0 1065369472
        %389 = vmatprep.subr.bf16.mxu0 0
        %390 = vmatpush1.bf16.msra.mxu0 1065369472
        %391 = vmatprep.subr.bf16.mxu0 0
        %392 = vmatpush1.bf16.msra.mxu0 1065369472
        %393 = vmatprep.subr.bf16.mxu0 0
        %394 = vmatpush1.bf16.msra.mxu0 1065369472
        %395 = vmatprep.subr.bf16.mxu0 0
        %396 = vmatpush1.bf16.msra.mxu0 1065369472
        %397 = vmatprep.subr.bf16.mxu0 0
        %398 = vmatpush1.bf16.msra.mxu0 1065369472
        %399 = vmatprep.subr.bf16.mxu0 0
        %400 = vmatpush1.bf16.msra.mxu0 1065369472
        %401 = vmatprep.subr.bf16.mxu0 0
        %402 = vmatpush1.bf16.msra.mxu0 0
        %403 = vmatprep.subr.bf16.mxu0 0
        %404 = vmatpush1.bf16.msra.mxu0 0
        %405 = vmatprep.subr.bf16.mxu0 0
        %406 = vmatpush1.bf16.msra.mxu0 0
        %407 = vmatprep.subr.bf16.mxu0 0
        %408 = vmatpush1.bf16.msra.mxu0 0
        %409 = vmatprep.subr.bf16.mxu0 0
        %410 = vmatpush1.bf16.msra.mxu0 0
        %411 = vmatprep.subr.bf16.mxu0 0
        %412 = vmatpush1.bf16.msra.mxu0 0
        %413 = vmatprep.subr.bf16.mxu0 0
        %414 = vmatpush1.bf16.msra.mxu0 0
        %415 = vmatprep.subr.bf16.mxu0 0
        %416 = vmatpush1.bf16.msra.mxu0 0
        %417 = vmatprep.mubr.bf16.mxu0 0
        %418 = vmatmul.mubr.bf16.gmra.mrb[0].mxu0 %v372
        %v419 = vpop.f32.mrb[0].mxu0
        %v420 = vadd.f32 0.0, %v419
        %v421 = vpop.f32.mrb[0].mxu0
        %v422 = vpop.f32.mrb[0].mxu0
        %v423 = vadd.f32 0.0, %v422
        %v424 = vpop.f32.mrb[0].mxu0
        %425 = vmatprep.mubr.bf16.mxu0 0
        %426 = vmatmul.mubr.bf16.gmra.mrb[0].mxu0 %v373
        %v427 = vpop.f32.mrb[0].mxu0
        %v428 = vadd.f32 0.0, %v427
        %v429 = vpop.f32.mrb[0].mxu0
        %v430 = vpop.f32.mrb[0].mxu0
        %v431 = vadd.f32 0.0, %v430
        %v432 = vpop.f32.mrb[0].mxu0
        %433 = vmatprep.mubr.bf16.mxu0 0
        %434 = vmatmul.mubr.bf16.gmra.mrb[0].mxu0 %v374
        %v435 = vpop.f32.mrb[0].mxu0
        %v436 = vadd.f32 0.0, %v435
        %v437 = vpop.f32.mrb[0].mxu0
        %v438 = vpop.f32.mrb[0].mxu0
        %v439 = vadd.f32 0.0, %v438
        %v440 = vpop.f32.mrb[0].mxu0
        %441 = vmatprep.mubr.bf16.mxu0 0
        %442 = vmatmul.mubr.bf16.gmra.mrb[0].mxu0 %v375
        %v443 = vpop.f32.mrb[0].mxu0
        %v444 = vadd.f32 0.0, %v443
        %v445 = vpop.f32.mrb[0].mxu0
        %v446 = vpop.f32.mrb[0].mxu0
        %v447 = vadd.f32 0.0, %v446
        %v448 = vpop.f32.mrb[0].mxu0
        %449 = vmatprep.mubr.bf16.mxu0 0
        %450 = vmatmul.mubr.bf16.gmra.mrb[0].mxu0 %v376
        %v451 = vpop.f32.mrb[0].mxu0
        %v452 = vadd.f32 0.0, %v451
        %v453 = vpop.f32.mrb[0].mxu0
        %v454 = vpop.f32.mrb[0].mxu0
        %v455 = vadd.f32 0.0, %v454
        %v456 = vpop.f32.mrb[0].mxu0
        %457 = vmatprep.mubr.bf16.mxu0 0
        %458 = vmatmul.mubr.bf16.gmra.mrb[0].mxu0 %v377
        %v459 = vpop.f32.mrb[0].mxu0
        %v460 = vadd.f32 0.0, %v459
        %v461 = vpop.f32.mrb[0].mxu0
        %v462 = vpop.f32.mrb[0].mxu0
        %v463 = vadd.f32 0.0, %v462
        %v464 = vpop.f32.mrb[0].mxu0
        %465 = vmatprep.mubr.bf16.mxu0 0
        %466 = vmatmul.mubr.bf16.gmra.mrb[0].mxu0 %v378
        %v467 = vpop.f32.mrb[0].mxu0
        %v468 = vadd.f32 0.0, %v467
        %v469 = vpop.f32.mrb[0].mxu0
        %v470 = vpop.f32.mrb[0].mxu0
        %v471 = vadd.f32 0.0, %v470
        %v472 = vpop.f32.mrb[0].mxu0
        %473 = vmatprep.mubr.bf16.mxu0 0
        %474 = vmatmul.mubr.bf16.gmra.mrb[0].mxu0 %v379
        %v475 = vpop.f32.mrb[0].mxu0
        %v476 = vadd.f32 0.0, %v475
        %v477 = vpop.f32.mrb[0].mxu0
        %v478 = vpop.f32.mrb[0].mxu0
        %v479 = vadd.f32 0.0, %v478
        %v480 = vpop.f32.mrb[0].mxu0
        %481 = vmatprep.mubr.bf16.mxu0 0
        %482 = vmatmul.mubr.bf16.gmra.mrb[0].mxu0 %v380
        %v483 = vpop.f32.mrb[0].mxu0
        %v484 = vadd.f32 0.0, %v483
        %v485 = vpop.f32.mrb[0].mxu0
        %v486 = vpop.f32.mrb[0].mxu0
        %v487 = vadd.f32 0.0, %v486
        %v488 = vpop.f32.mrb[0].mxu0
        %489 = vmatprep.mubr.bf16.mxu0 0
        %490 = vmatmul.mubr.bf16.gmra.mrb[0].mxu0 %v381
        %v491 = vpop.f32.mrb[0].mxu0
        %v492 = vadd.f32 0.0, %v491
        %v493 = vpop.f32.mrb[0].mxu0
        %v494 = vpop.f32.mrb[0].mxu0
        %v495 = vadd.f32 0.0, %v494
        %v496 = vpop.f32.mrb[0].mxu0
        %497 = vmatprep.mubr.bf16.mxu0 0
        %498 = vmatmul.mubr.bf16.gmra.mrb[0].mxu0 %v382
        %v499 = vpop.f32.mrb[0].mxu0
        %v500 = vadd.f32 0.0, %v499
        %v501 = vpop.f32.mrb[0].mxu0
        %v502 = vpop.f32.mrb[0].mxu0
        %v503 = vadd.f32 0.0, %v502
        %v504 = vpop.f32.mrb[0].mxu0
        %505 = vmatprep.mubr.bf16.mxu0 0
        %506 = vmatmul.mubr.bf16.gmra.mrb[0].mxu0 %v383
        %v507 = vpop.f32.mrb[0].mxu0
        %v508 = vadd.f32 0.0, %v507
        %v509 = vpop.f32.mrb[0].mxu0
        %v510 = vpop.f32.mrb[0].mxu0
        %v511 = vadd.f32 0.0, %v510
        %v512 = vpop.f32.mrb[0].mxu0
        %513 = vmatprep.mubr.bf16.mxu0 0
        %514 = vmatmul.mubr.bf16.gmra.mrb[0].mxu0 %v384
        %v515 = vpop.f32.mrb[0].mxu0
        %v516 = vadd.f32 0.0, %v515
        %v517 = vpop.f32.mrb[0].mxu0
        %v518 = vpop.f32.mrb[0].mxu0
        %v519 = vpop.f32.mrb[0].mxu0
        %520 = vdwg.mxu0
        %v521 = vmax.f32 %v420, 0.0
        %v522 = vmax.f32 %v423, 0.0
        %v523 = vmax.f32 %v428, 0.0
        %v524 = vmax.f32 %v431, 0.0
        %v525 = vmax.f32 %v436, 0.0
        %v526 = vmax.f32 %v439, 0.0
        %v527 = vmax.f32 %v444, 0.0
        %v528 = vmax.f32 %v447, 0.0
        %v529 = vmax.f32 %v452, 0.0
        %v530 = vmax.f32 %v455, 0.0
        %v531 = vmax.f32 %v460, 0.0
        %v532 = vmax.f32 %v463, 0.0
        %v533 = vmax.f32 %v468, 0.0
        %v534 = vmax.f32 %v471, 0.0
        %v535 = vmax.f32 %v476, 0.0
        %v536 = vmax.f32 %v479, 0.0
        %v537 = vmax.f32 %v484, 0.0
        %v538 = vmax.f32 %v487, 0.0
        %v539 = vmax.f32 %v492, 0.0
        %v540 = vmax.f32 %v495, 0.0
        %v541 = vmax.f32 %v500, 0.0
        %v542 = vmax.f32 %v503, 0.0
        %v543 = vmax.f32 %v508, 0.0
        %v544 = vmax.f32 %v511, 0.0
        %v545 = vmax.f32 %v516, 0.0
        %v546 = vmul.f32 %v521, 0.007874016
        %v547 = vmul.f32 %v522, 0.007874016
        %v548 = vmul.f32 %v523, 0.007874016
        %v549 = vmul.f32 %v524, 0.007874016
        %v550 = vmul.f32 %v525, 0.007874016
        %v551 = vmul.f32 %v526, 0.007874016
        %v552 = vmul.f32 %v527, 0.007874016
        %v553 = vmul.f32 %v528, 0.007874016
        %v554 = vmul.f32 %v529, 0.007874016
        %v555 = vmul.f32 %v530, 0.007874016
        %v556 = vmul.f32 %v531, 0.007874016
        %v557 = vmul.f32 %v532, 0.007874016
        %v558 = vmul.f32 %v533, 0.007874016
        %v559 = vmul.f32 %v534, 0.007874016
        %v560 = vmul.f32 %v535, 0.007874016
        %v561 = vmul.f32 %v536, 0.007874016
        %v562 = vmul.f32 %v537, 0.007874016
        %v563 = vmul.f32 %v538, 0.007874016
        %v564 = vmul.f32 %v539, 0.007874016
        %v565 = vmul.f32 %v540, 0.007874016
        %v566 = vmul.f32 %v541, 0.007874016
        %v567 = vmul.f32 %v542, 0.007874016
        %v568 = vmul.f32 %v543, 0.007874016
        %v569 = vmul.f32 %v544, 0.007874016
        %v570 = vmul.f32 %v545, 0.007874016
        %v571 = vrsqrt.pop %v546
        %v572 = vmul.f32 %v546, %v571
        %vm573 = vcmp.eq.f32.partialorder %v546, inf
        %v574 = vsel %vm573, %v546, %v572
        %vm575 = vcmp.eq.f32.partialorder %v546, 0.0
        %v576 = vand.u32 %v546, 2147483648
        %v577 = vsel %vm575, %v576, %v574
        %v578 = vrsqrt.pop %v547
        %v579 = vmul.f32 %v547, %v578
        %vm580 = vcmp.eq.f32.partialorder %v547, inf
        %v581 = vsel %vm580, %v547, %v579
        %vm582 = vcmp.eq.f32.partialorder %v547, 0.0
        %v583 = vand.u32 %v547, 2147483648
        %v584 = vsel %vm582, %v583, %v581
        %v585 = vrsqrt.pop %v548
        %v586 = vmul.f32 %v548, %v585
        %vm587 = vcmp.eq.f32.partialorder %v548, inf
        %v588 = vsel %vm587, %v548, %v586
        %vm589 = vcmp.eq.f32.partialorder %v548, 0.0
        %v590 = vand.u32 %v548, 2147483648
        %v591 = vsel %vm589, %v590, %v588
        %v592 = vrsqrt.pop %v549
        %v593 = vmul.f32 %v549, %v592
        %vm594 = vcmp.eq.f32.partialorder %v549, inf
        %v595 = vsel %vm594, %v549, %v593
        %vm596 = vcmp.eq.f32.partialorder %v549, 0.0
        %v597 = vand.u32 %v549, 2147483648
        %v598 = vsel %vm596, %v597, %v595
        %v599 = vrsqrt.pop %v550
        %v600 = vmul.f32 %v550, %v599
        %vm601 = vcmp.eq.f32.partialorder %v550, inf
        %v602 = vsel %vm601, %v550, %v600
        %vm603 = vcmp.eq.f32.partialorder %v550, 0.0
        %v604 = vand.u32 %v550, 2147483648
        %v605 = vsel %vm603, %v604, %v602
        %v606 = vrsqrt.pop %v551
        %v607 = vmul.f32 %v551, %v606
        %vm608 = vcmp.eq.f32.partialorder %v551, inf
        %v609 = vsel %vm608, %v551, %v607
        %vm610 = vcmp.eq.f32.partialorder %v551, 0.0
        %v611 = vand.u32 %v551, 2147483648
        %v612 = vsel %vm610, %v611, %v609
        %v613 = vrsqrt.pop %v552
        %v614 = vmul.f32 %v552, %v613
        %vm615 = vcmp.eq.f32.partialorder %v552, inf
        %v616 = vsel %vm615, %v552, %v614
        %vm617 = vcmp.eq.f32.partialorder %v552, 0.0
        %v618 = vand.u32 %v552, 2147483648
        %v619 = vsel %vm617, %v618, %v616
        %v620 = vrsqrt.pop %v553
        %v621 = vmul.f32 %v553, %v620
        %vm622 = vcmp.eq.f32.partialorder %v553, inf
        %v623 = vsel %vm622, %v553, %v621
        %vm624 = vcmp.eq.f32.partialorder %v553, 0.0
        %v625 = vand.u32 %v553, 2147483648
        %v626 = vsel %vm624, %v625, %v623
        %v627 = vrsqrt.pop %v554
        %v628 = vmul.f32 %v554, %v627
        %vm629 = vcmp.eq.f32.partialorder %v554, inf
        %v630 = vsel %vm629, %v554, %v628
        %vm631 = vcmp.eq.f32.partialorder %v554, 0.0
        %v632 = vand.u32 %v554, 2147483648
        %v633 = vsel %vm631, %v632, %v630
        %v634 = vrsqrt.pop %v555
        %v635 = vmul.f32 %v555, %v634
        %vm636 = vcmp.eq.f32.partialorder %v555, inf
        %v637 = vsel %vm636, %v555, %v635
        %vm638 = vcmp.eq.f32.partialorder %v555, 0.0
        %v639 = vand.u32 %v555, 2147483648
        %v640 = vsel %vm638, %v639, %v637
        %v641 = vrsqrt.pop %v556
        %v642 = vmul.f32 %v556, %v641
        %vm643 = vcmp.eq.f32.partialorder %v556, inf
        %v644 = vsel %vm643, %v556, %v642
        %vm645 = vcmp.eq.f32.partialorder %v556, 0.0
        %v646 = vand.u32 %v556, 2147483648
        %v647 = vsel %vm645, %v646, %v644
        %v648 = vrsqrt.pop %v557
        %v649 = vmul.f32 %v557, %v648
        %vm650 = vcmp.eq.f32.partialorder %v557, inf
        %v651 = vsel %vm650, %v557, %v649
        %vm652 = vcmp.eq.f32.partialorder %v557, 0.0
        %v653 = vand.u32 %v557, 2147483648
        %v654 = vsel %vm652, %v653, %v651
        %v655 = vrsqrt.pop %v558
        %v656 = vmul.f32 %v558, %v655
        %vm657 = vcmp.eq.f32.partialorder %v558, inf
        %v658 = vsel %vm657, %v558, %v656
        %vm659 = vcmp.eq.f32.partialorder %v558, 0.0
        %v660 = vand.u32 %v558, 2147483648
        %v661 = vsel %vm659, %v660, %v658
        %v662 = vrsqrt.pop %v559
        %v663 = vmul.f32 %v559, %v662
        %vm664 = vcmp.eq.f32.partialorder %v559, inf
        %v665 = vsel %vm664, %v559, %v663
        %vm666 = vcmp.eq.f32.partialorder %v559, 0.0
        %v667 = vand.u32 %v559, 2147483648
        %v668 = vsel %vm666, %v667, %v665
        %v669 = vrsqrt.pop %v560
        %v670 = vmul.f32 %v560, %v669
        %vm671 = vcmp.eq.f32.partialorder %v560, inf
        %v672 = vsel %vm671, %v560, %v670
        %vm673 = vcmp.eq.f32.partialorder %v560, 0.0
        %v674 = vand.u32 %v560, 2147483648
        %v675 = vsel %vm673, %v674, %v672
        %v676 = vrsqrt.pop %v561
        %v677 = vmul.f32 %v561, %v676
        %vm678 = vcmp.eq.f32.partialorder %v561, inf
        %v679 = vsel %vm678, %v561, %v677
        %vm680 = vcmp.eq.f32.partialorder %v561, 0.0
        %v681 = vand.u32 %v561, 2147483648
        %v682 = vsel %vm680, %v681, %v679
        %v683 = vrsqrt.pop %v562
        %v684 = vmul.f32 %v562, %v683
        %vm685 = vcmp.eq.f32.partialorder %v562, inf
        %v686 = vsel %vm685, %v562, %v684
        %vm687 = vcmp.eq.f32.partialorder %v562, 0.0
        %v688 = vand.u32 %v562, 2147483648
        %v689 = vsel %vm687, %v688, %v686
        %v690 = vrsqrt.pop %v563
        %v691 = vmul.f32 %v563, %v690
        %vm692 = vcmp.eq.f32.partialorder %v563, inf
        %v693 = vsel %vm692, %v563, %v691
        %vm694 = vcmp.eq.f32.partialorder %v563, 0.0
        %v695 = vand.u32 %v563, 2147483648
        %v696 = vsel %vm694, %v695, %v693
        %v697 = vrsqrt.pop %v564
        %v698 = vmul.f32 %v564, %v697
        %vm699 = vcmp.eq.f32.partialorder %v564, inf
        %v700 = vsel %vm699, %v564, %v698
        %vm701 = vcmp.eq.f32.partialorder %v564, 0.0
        %v702 = vand.u32 %v564, 2147483648
        %v703 = vsel %vm701, %v702, %v700
        %v704 = vrsqrt.pop %v565
        %v705 = vmul.f32 %v565, %v704
        %vm706 = vcmp.eq.f32.partialorder %v565, inf
        %v707 = vsel %vm706, %v565, %v705
        %vm708 = vcmp.eq.f32.partialorder %v565, 0.0
        %v709 = vand.u32 %v565, 2147483648
        %v710 = vsel %vm708, %v709, %v707
        %v711 = vrsqrt.pop %v566
        %v712 = vmul.f32 %v566, %v711
        %vm713 = vcmp.eq.f32.partialorder %v566, inf
        %v714 = vsel %vm713, %v566, %v712
        %vm715 = vcmp.eq.f32.partialorder %v566, 0.0
        %v716 = vand.u32 %v566, 2147483648
        %v717 = vsel %vm715, %v716, %v714
        %v718 = vrsqrt.pop %v567
        %v719 = vmul.f32 %v567, %v718
        %vm720 = vcmp.eq.f32.partialorder %v567, inf
        %v721 = vsel %vm720, %v567, %v719
        %vm722 = vcmp.eq.f32.partialorder %v567, 0.0
        %v723 = vand.u32 %v567, 2147483648
        %v724 = vsel %vm722, %v723, %v721
        %v725 = vrsqrt.pop %v568
        %v726 = vmul.f32 %v568, %v725
        %vm727 = vcmp.eq.f32.partialorder %v568, inf
        %v728 = vsel %vm727, %v568, %v726
        %vm729 = vcmp.eq.f32.partialorder %v568, 0.0
        %v730 = vand.u32 %v568, 2147483648
        %v731 = vsel %vm729, %v730, %v728
        %v732 = vrsqrt.pop %v569
        %v733 = vmul.f32 %v569, %v732
        %vm734 = vcmp.eq.f32.partialorder %v569, inf
        %v735 = vsel %vm734, %v569, %v733
        %vm736 = vcmp.eq.f32.partialorder %v569, 0.0
        %v737 = vand.u32 %v569, 2147483648
        %v738 = vsel %vm736, %v737, %v735
        %v739 = vrsqrt.pop %v570
        %v740 = vmul.f32 %v570, %v739
        %vm741 = vcmp.eq.f32.partialorder %v570, inf
        %v742 = vsel %vm741, %v570, %v740
        %vm743 = vcmp.eq.f32.partialorder %v570, 0.0
        %v744 = vand.u32 %v570, 2147483648
        %v745 = vsel %vm743, %v744, %v742
        %v746 = vadd.f32 %v577, 1e-06
        %v747 = vadd.f32 %v584, 1e-06
        %v748 = vadd.f32 %v591, 1e-06
        %v749 = vadd.f32 %v598, 1e-06
        %v750 = vadd.f32 %v605, 1e-06
        %v751 = vadd.f32 %v612, 1e-06
        %v752 = vadd.f32 %v619, 1e-06
        %v753 = vadd.f32 %v626, 1e-06
        %v754 = vadd.f32 %v633, 1e-06
        %v755 = vadd.f32 %v640, 1e-06
        %v756 = vadd.f32 %v647, 1e-06
        %v757 = vadd.f32 %v654, 1e-06
        %v758 = vadd.f32 %v661, 1e-06
        %v759 = vadd.f32 %v668, 1e-06
        %v760 = vadd.f32 %v675, 1e-06
        %v761 = vadd.f32 %v682, 1e-06
        %v762 = vadd.f32 %v689, 1e-06
        %v763 = vadd.f32 %v696, 1e-06
        %v764 = vadd.f32 %v703, 1e-06
        %v765 = vadd.f32 %v710, 1e-06
        %v766 = vadd.f32 %v717, 1e-06
        %v767 = vadd.f32 %v724, 1e-06
        %v768 = vadd.f32 %v731, 1e-06
        %v769 = vadd.f32 %v738, 1e-06
        %v770 = vadd.f32 %v745, 1e-06
        %v771 = vrcp.pop %v746
        %v772 = vrcp.pop %v747
        %v773 = vrcp.pop %v748
        %v774 = vrcp.pop %v749
        %v775 = vrcp.pop %v750
        %v776 = vrcp.pop %v751
        %v777 = vrcp.pop %v752
        %v778 = vrcp.pop %v753
        %v779 = vrcp.pop %v754
        %v780 = vrcp.pop %v755
        %v781 = vrcp.pop %v756
        %v782 = vrcp.pop %v757
        %v783 = vrcp.pop %v758
        %v784 = vrcp.pop %v759
        %v785 = vrcp.pop %v760
        %v786 = vrcp.pop %v761
        %v787 = vrcp.pop %v762
        %v788 = vrcp.pop %v763
        %v789 = vrcp.pop %v764
        %v790 = vrcp.pop %v765
        %v791 = vrcp.pop %v766
        %v792 = vrcp.pop %v767
        %v793 = vrcp.pop %v768
        %v794 = vrcp.pop %v769
        %v795 = vrcp.pop %v770
        %797 = vset.pattern.permute.xlu0 0
        %798 = vperm.xlu0 %797, %v771
        %v799 = vpop.permute.xlu0 %798
        %802 = vset.pattern.permute.xlu0 0
        %803 = vperm.xlu0 %802, %v772
        %v804 = vpop.permute.xlu0 %803
        %807 = vset.pattern.permute.xlu0 0
        %808 = vperm.xlu0 %807, %v773
        %v809 = vpop.permute.xlu0 %808
        %812 = vset.pattern.permute.xlu0 0
        %813 = vperm.xlu0 %812, %v774
        %v814 = vpop.permute.xlu0 %813
        %817 = vset.pattern.permute.xlu0 0
        %818 = vperm.xlu0 %817, %v775
        %v819 = vpop.permute.xlu0 %818
        %822 = vset.pattern.permute.xlu0 0
        %823 = vperm.xlu0 %822, %v776
        %v824 = vpop.permute.xlu0 %823
        %827 = vset.pattern.permute.xlu0 0
        %828 = vperm.xlu0 %827, %v777
        %v829 = vpop.permute.xlu0 %828
        %832 = vset.pattern.permute.xlu0 0
        %833 = vperm.xlu0 %832, %v778
        %v834 = vpop.permute.xlu0 %833
        %837 = vset.pattern.permute.xlu0 0
        %838 = vperm.xlu0 %837, %v779
        %v839 = vpop.permute.xlu0 %838
        %842 = vset.pattern.permute.xlu0 0
        %843 = vperm.xlu0 %842, %v780
        %v844 = vpop.permute.xlu0 %843
        %847 = vset.pattern.permute.xlu0 0
        %848 = vperm.xlu0 %847, %v781
        %v849 = vpop.permute.xlu0 %848
        %852 = vset.pattern.permute.xlu0 0
        %853 = vperm.xlu0 %852, %v782
        %v854 = vpop.permute.xlu0 %853
        %857 = vset.pattern.permute.xlu0 0
        %858 = vperm.xlu0 %857, %v783
        %v859 = vpop.permute.xlu0 %858
        %862 = vset.pattern.permute.xlu0 0
        %863 = vperm.xlu0 %862, %v784
        %v864 = vpop.permute.xlu0 %863
        %867 = vset.pattern.permute.xlu0 0
        %868 = vperm.xlu0 %867, %v785
        %v869 = vpop.permute.xlu0 %868
        %872 = vset.pattern.permute.xlu0 0
        %873 = vperm.xlu0 %872, %v786
        %v874 = vpop.permute.xlu0 %873
        %877 = vset.pattern.permute.xlu0 0
        %878 = vperm.xlu0 %877, %v787
        %v879 = vpop.permute.xlu0 %878
        %882 = vset.pattern.permute.xlu0 0
        %883 = vperm.xlu0 %882, %v788
        %v884 = vpop.permute.xlu0 %883
        %887 = vset.pattern.permute.xlu0 0
        %888 = vperm.xlu0 %887, %v789
        %v889 = vpop.permute.xlu0 %888
        %892 = vset.pattern.permute.xlu0 0
        %893 = vperm.xlu0 %892, %v790
        %v894 = vpop.permute.xlu0 %893
        %897 = vset.pattern.permute.xlu0 0
        %898 = vperm.xlu0 %897, %v791
        %v899 = vpop.permute.xlu0 %898
        %902 = vset.pattern.permute.xlu0 0
        %903 = vperm.xlu0 %902, %v792
        %v904 = vpop.permute.xlu0 %903
        %907 = vset.pattern.permute.xlu0 0
        %908 = vperm.xlu0 %907, %v793
        %v909 = vpop.permute.xlu0 %908
        %912 = vset.pattern.permute.xlu0 0
        %913 = vperm.xlu0 %912, %v794
        %v914 = vpop.permute.xlu0 %913
        %917 = vset.pattern.permute.xlu0 0
        %918 = vperm.xlu0 %917, %v795
        %v919 = vpop.permute.xlu0 %918
        %v921 = vmul.f32 %v322, %v799
        %v922 = vmul.f32 %v323, %v804
        %v923 = vmul.f32 %v324, %v809
        %v924 = vmul.f32 %v325, %v814
        %v925 = vmul.f32 %v326, %v819
        %v926 = vmul.f32 %v327, %v824
        %v927 = vmul.f32 %v328, %v829
        %v928 = vmul.f32 %v329, %v834
        %v929 = vmul.f32 %v330, %v839
        %v930 = vmul.f32 %v331, %v844
        %v931 = vmul.f32 %v332, %v849
        %v932 = vmul.f32 %v333, %v854
        %v933 = vmul.f32 %v334, %v859
        %v934 = vmul.f32 %v335, %v864
        %v935 = vmul.f32 %v336, %v869
        %v936 = vmul.f32 %v337, %v874
        %v937 = vmul.f32 %v338, %v879
        %v938 = vmul.f32 %v339, %v884
        %v939 = vmul.f32 %v340, %v889
        %v940 = vmul.f32 %v341, %v894
        %v941 = vmul.f32 %v342, %v899
        %v942 = vmul.f32 %v343, %v904
        %v943 = vmul.f32 %v344, %v909
        %v944 = vmul.f32 %v345, %v914
        %v945 = vmul.f32 %v346, %v919
        %v946 = vpack.c.bf16 %v922, %v921
        %v947 = vpack.c.bf16 %v924, %v923
        %v948 = vpack.c.bf16 %v926, %v925
        %v949 = vpack.c.bf16 %v928, %v927
        %v950 = vpack.c.bf16 %v930, %v929
        %v951 = vpack.c.bf16 %v932, %v931
        %v952 = vpack.c.bf16 %v934, %v933
        %v953 = vpack.c.bf16 %v936, %v935
        %v954 = vpack.c.bf16 %v938, %v937
        %v955 = vpack.c.bf16 %v940, %v939
        %v956 = vpack.c.bf16 %v942, %v941
        %v957 = vpack.c.bf16 %v944, %v943
        %v958 = vpack.c.bf16 %v945, %v945
        %v959 = vld [vmem:[#allocation5] sm:$0xf]
        %v960 = vld [vmem:[#allocation5 + $0x4] sm:$0xf]
        %v961 = vld [vmem:[#allocation5 + $0x8] sm:$0xf]
        %v962 = vld [vmem:[#allocation5 + $0xc] sm:$0xf]
        %v963 = vld [vmem:[#allocation5 + $0x10] sm:$0xf]
        %v964 = vld [vmem:[#allocation5 + $0x14] sm:$0xf]
        %v965 = vld [vmem:[#allocation5 + $0x18] sm:$0xf]
        %v966 = vld [vmem:[#allocation5 + $0x1c] sm:$0xf]
        %v967 = vld [vmem:[#allocation5 + $0x20] sm:$0xf]
        %v968 = vld [vmem:[#allocation5 + $0x24] sm:$0xf]
        %v969 = vld [vmem:[#allocation5 + $0x28] sm:$0xf]
        %v970 = vld [vmem:[#allocation5 + $0x2c] sm:$0xf]
        %v971 = vld [vmem:[#allocation5 + $0x30] sm:$0xf]
        %v972 = vld [vmem:[#allocation5 + $0x34] sm:$0xf]
        %v973 = vld [vmem:[#allocation5 + $0x38] sm:$0xf]
        %v974 = vld [vmem:[#allocation5 + $0x3c] sm:$0xf]
        %v975 = vld [vmem:[%s2] sm:$0x1]
        %v977 = vlaneseq
        %v978 = vshrl.u32 %v977, 7
        %v979 = vsub.s32 0, %v978
        %v980 = vrot.slane %v975, %v979
        %v998 = vunpack.c.l.b16 %v959
        %v999 = vunpack.c.l.b16 %v960
        %v1000 = vunpack.c.l.b16 %v961
        %v1001 = vunpack.c.l.b16 %v962
        %v1002 = vunpack.c.l.b16 %v963
        %v1003 = vunpack.c.l.b16 %v964
        %v1004 = vunpack.c.l.b16 %v965
        %v1005 = vunpack.c.l.b16 %v966
        %v1006 = vunpack.c.l.b16 %v967
        %v1007 = vunpack.c.l.b16 %v968
        %v1008 = vunpack.c.l.b16 %v969
        %v1009 = vunpack.c.l.b16 %v970
        %v1010 = vunpack.c.l.b16 %v971
        %v1011 = vunpack.c.l.b16 %v972
        %v1012 = vunpack.c.l.b16 %v973
        %v1013 = vunpack.c.l.b16 %v974
        %v1014 = vpack.c.b16 %v999, %v998
        %v1015 = vpack.c.b16 %v1001, %v1000
        %v1016 = vpack.c.b16 %v1003, %v1002
        %v1017 = vpack.c.b16 %v1005, %v1004
        %v1018 = vpack.c.b16 %v1007, %v1006
        %v1019 = vpack.c.b16 %v1009, %v1008
        %v1020 = vpack.c.b16 %v1011, %v1010
        %v1021 = vpack.c.b16 %v1013, %v1012
        %1030 = vmatprep.subr.bf16.mxu0 0
        %1031 = vmatpush1.bf16.msra.mxu0 %v1014
        %1032 = vmatprep.subr.bf16.mxu0 0
        %1033 = vmatpush1.bf16.msra.mxu0 %v1015
        %1034 = vmatprep.subr.bf16.mxu0 0
        %1035 = vmatpush1.bf16.msra.mxu0 %v1016
        %1036 = vmatprep.subr.bf16.mxu0 0
        %1037 = vmatpush1.bf16.msra.mxu0 %v1017
        %1038 = vmatprep.subr.bf16.mxu0 0
        %1039 = vmatpush1.bf16.msra.mxu0 %v1018
        %1040 = vmatprep.subr.bf16.mxu0 0
        %1041 = vmatpush1.bf16.msra.mxu0 %v1019
        %1042 = vmatprep.subr.bf16.mxu0 0
        %1043 = vmatpush1.bf16.msra.mxu0 %v1020
        %1044 = vmatprep.subr.bf16.mxu0 0
        %1045 = vmatpush1.bf16.msra.mxu0 %v1021
        %1046 = vmatprep.subr.bf16.mxu0 0
        %1047 = vmatpush1.bf16.msra.mxu0 0
        %1048 = vmatprep.subr.bf16.mxu0 0
        %1049 = vmatpush1.bf16.msra.mxu0 0
        %1050 = vmatprep.subr.bf16.mxu0 0
        %1051 = vmatpush1.bf16.msra.mxu0 0
        %1052 = vmatprep.subr.bf16.mxu0 0
        %1053 = vmatpush1.bf16.msra.mxu0 0
        %1054 = vmatprep.subr.bf16.mxu0 0
        %1055 = vmatpush1.bf16.msra.mxu0 0
        %1056 = vmatprep.subr.bf16.mxu0 0
        %1057 = vmatpush1.bf16.msra.mxu0 0
        %1058 = vmatprep.subr.bf16.mxu0 0
        %1059 = vmatpush1.bf16.msra.mxu0 0
        %1060 = vmatprep.subr.bf16.mxu0 0
        %1061 = vmatpush1.bf16.msra.mxu0 0
        %1062 = vmatprep.mubr.bf16.mxu0 0
        %1063 = vmatmul.mubr.bf16.gmra.mrb[0].mxu0 %v946
        %v1064 = vpop.f32.mrb[0].mxu0
        %v1065 = vadd.f32 %v980, %v1064
        %v1066 = vpop.f32.mrb[0].mxu0
        %v1067 = vpop.f32.mrb[0].mxu0
        %v1068 = vadd.f32 %v980, %v1067
        %v1069 = vpop.f32.mrb[0].mxu0
        %1070 = vmatprep.mubr.bf16.mxu0 0
        %1071 = vmatmul.mubr.bf16.gmra.mrb[0].mxu0 %v947
        %v1072 = vpop.f32.mrb[0].mxu0
        %v1073 = vadd.f32 %v980, %v1072
        %v1074 = vpop.f32.mrb[0].mxu0
        %v1075 = vpop.f32.mrb[0].mxu0
        %v1076 = vadd.f32 %v980, %v1075
        %v1077 = vpop.f32.mrb[0].mxu0
        %1078 = vmatprep.mubr.bf16.mxu0 0
        %1079 = vmatmul.mubr.bf16.gmra.mrb[0].mxu0 %v948
        %v1080 = vpop.f32.mrb[0].mxu0
        %v1081 = vadd.f32 %v980, %v1080
        %v1082 = vpop.f32.mrb[0].mxu0
        %v1083 = vpop.f32.mrb[0].mxu0
        %v1084 = vadd.f32 %v980, %v1083
        %v1085 = vpop.f32.mrb[0].mxu0
        %1086 = vmatprep.mubr.bf16.mxu0 0
        %1087 = vmatmul.mubr.bf16.gmra.mrb[0].mxu0 %v949
        %v1088 = vpop.f32.mrb[0].mxu0
        %v1089 = vadd.f32 %v980, %v1088
        %v1090 = vpop.f32.mrb[0].mxu0
        %v1091 = vpop.f32.mrb[0].mxu0
        %v1092 = vadd.f32 %v980, %v1091
        %v1093 = vpop.f32.mrb[0].mxu0
        %1094 = vmatprep.mubr.bf16.mxu0 0
        %1095 = vmatmul.mubr.bf16.gmra.mrb[0].mxu0 %v950
        %v1096 = vpop.f32.mrb[0].mxu0
        %v1097 = vadd.f32 %v980, %v1096
        %v1098 = vpop.f32.mrb[0].mxu0
        %v1099 = vpop.f32.mrb[0].mxu0
        %v1100 = vadd.f32 %v980, %v1099
        %v1101 = vpop.f32.mrb[0].mxu0
        %1102 = vmatprep.mubr.bf16.mxu0 0
        %1103 = vmatmul.mubr.bf16.gmra.mrb[0].mxu0 %v951
        %v1104 = vpop.f32.mrb[0].mxu0
        %v1105 = vadd.f32 %v980, %v1104
        %v1106 = vpop.f32.mrb[0].mxu0
        %v1107 = vpop.f32.mrb[0].mxu0
        %v1108 = vadd.f32 %v980, %v1107
        %v1109 = vpop.f32.mrb[0].mxu0
        %1110 = vmatprep.mubr.bf16.mxu0 0
        %1111 = vmatmul.mubr.bf16.gmra.mrb[0].mxu0 %v952
        %v1112 = vpop.f32.mrb[0].mxu0
        %v1113 = vadd.f32 %v980, %v1112
        %v1114 = vpop.f32.mrb[0].mxu0
        %v1115 = vpop.f32.mrb[0].mxu0
        %v1116 = vadd.f32 %v980, %v1115
        %v1117 = vpop.f32.mrb[0].mxu0
        %1118 = vmatprep.mubr.bf16.mxu0 0
        %1119 = vmatmul.mubr.bf16.gmra.mrb[0].mxu0 %v953
        %v1120 = vpop.f32.mrb[0].mxu0
        %v1121 = vadd.f32 %v980, %v1120
        %v1122 = vpop.f32.mrb[0].mxu0
        %v1123 = vpop.f32.mrb[0].mxu0
        %v1124 = vadd.f32 %v980, %v1123
        %v1125 = vpop.f32.mrb[0].mxu0
        %1126 = vmatprep.mubr.bf16.mxu0 0
        %1127 = vmatmul.mubr.bf16.gmra.mrb[0].mxu0 %v954
        %v1128 = vpop.f32.mrb[0].mxu0
        %v1129 = vadd.f32 %v980, %v1128
        %v1130 = vpop.f32.mrb[0].mxu0
        %v1131 = vpop.f32.mrb[0].mxu0
        %v1132 = vadd.f32 %v980, %v1131
        %v1133 = vpop.f32.mrb[0].mxu0
        %1134 = vmatprep.mubr.bf16.mxu0 0
        %1135 = vmatmul.mubr.bf16.gmra.mrb[0].mxu0 %v955
        %v1136 = vpop.f32.mrb[0].mxu0
        %v1137 = vadd.f32 %v980, %v1136
        %v1138 = vpop.f32.mrb[0].mxu0
        %v1139 = vpop.f32.mrb[0].mxu0
        %v1140 = vadd.f32 %v980, %v1139
        %v1141 = vpop.f32.mrb[0].mxu0
        %1142 = vmatprep.mubr.bf16.mxu0 0
        %1143 = vmatmul.mubr.bf16.gmra.mrb[0].mxu0 %v956
        %v1144 = vpop.f32.mrb[0].mxu0
        %v1145 = vadd.f32 %v980, %v1144
        %v1146 = vpop.f32.mrb[0].mxu0
        %v1147 = vpop.f32.mrb[0].mxu0
        %v1148 = vadd.f32 %v980, %v1147
        %v1149 = vpop.f32.mrb[0].mxu0
        %1150 = vmatprep.mubr.bf16.mxu0 0
        %1151 = vmatmul.mubr.bf16.gmra.mrb[0].mxu0 %v957
        %v1152 = vpop.f32.mrb[0].mxu0
        %v1153 = vadd.f32 %v980, %v1152
        %v1154 = vpop.f32.mrb[0].mxu0
        %v1155 = vpop.f32.mrb[0].mxu0
        %v1156 = vadd.f32 %v980, %v1155
        %v1157 = vpop.f32.mrb[0].mxu0
        %1158 = vmatprep.mubr.bf16.mxu0 0
        %1159 = vmatmul.mubr.bf16.gmra.mrb[0].mxu0 %v958
        %v1160 = vpop.f32.mrb[0].mxu0
        %v1161 = vadd.f32 %v980, %v1160
        %v1162 = vpop.f32.mrb[0].mxu0
        %v1163 = vpop.f32.mrb[0].mxu0
        %v1164 = vpop.f32.mrb[0].mxu0
        %1165 = vdwg.mxu0
        %v1166 = vadd.f32 %v222, %v1065
        %v1167 = vadd.f32 %v223, %v1068
        %v1168 = vadd.f32 %v224, %v1073
        %v1169 = vadd.f32 %v225, %v1076
        %v1170 = vadd.f32 %v226, %v1081
        %v1171 = vadd.f32 %v227, %v1084
        %v1172 = vadd.f32 %v228, %v1089
        %v1173 = vadd.f32 %v229, %v1092
        %v1174 = vadd.f32 %v230, %v1097
        %v1175 = vadd.f32 %v231, %v1100
        %v1176 = vadd.f32 %v232, %v1105
        %v1177 = vadd.f32 %v233, %v1108
        %v1178 = vadd.f32 %v234, %v1113
        %v1179 = vadd.f32 %v235, %v1116
        %v1180 = vadd.f32 %v236, %v1121
        %v1181 = vadd.f32 %v237, %v1124
        %v1182 = vadd.f32 %v238, %v1129
        %v1183 = vadd.f32 %v239, %v1132
        %v1184 = vadd.f32 %v240, %v1137
        %v1185 = vadd.f32 %v241, %v1140
        %v1186 = vadd.f32 %v242, %v1145
        %v1187 = vadd.f32 %v243, %v1148
        %v1188 = vadd.f32 %v244, %v1153
        %v1189 = vadd.f32 %v245, %v1156
        %v1190 = vadd.f32 %v246, %v1161
        %1191 = vst [vmem:[%s209] sm:$0xff] %v1166
        %1192 = vst [vmem:[%s209 + $0x8] sm:$0xff] %v1167
        %1193 = vst [vmem:[%s209 + $0x10] sm:$0xff] %v1168
        %1194 = vst [vmem:[%s209 + $0x18] sm:$0xff] %v1169
        %1195 = vst [vmem:[%s209 + $0x20] sm:$0xff] %v1170
        %1196 = vst [vmem:[%s209 + $0x28] sm:$0xff] %v1171
        %1197 = vst [vmem:[%s209 + $0x30] sm:$0xff] %v1172
        %1198 = vst [vmem:[%s209 + $0x38] sm:$0xff] %v1173
        %1199 = vst [vmem:[%s209 + $0x40] sm:$0xff] %v1174
        %1200 = vst [vmem:[%s209 + $0x48] sm:$0xff] %v1175
        %1201 = vst [vmem:[%s209 + $0x50] sm:$0xff] %v1176
        %1202 = vst [vmem:[%s209 + $0x58] sm:$0xff] %v1177
        %1203 = vst [vmem:[%s209 + $0x60] sm:$0xff] %v1178
        %1204 = vst [vmem:[%s209 + $0x68] sm:$0xff] %v1179
        %1205 = vst [vmem:[%s209 + $0x70] sm:$0xff] %v1180
        %1206 = vst [vmem:[%s209 + $0x78] sm:$0xff] %v1181
        %1207 = vst [vmem:[%s209 + $0x80] sm:$0xff] %v1182
        %1208 = vst [vmem:[%s209 + $0x88] sm:$0xff] %v1183
        %1209 = vst [vmem:[%s209 + $0x90] sm:$0xff] %v1184
        %1210 = vst [vmem:[%s209 + $0x98] sm:$0xff] %v1185
        %1211 = vst [vmem:[%s209 + $0xa0] sm:$0xff] %v1186
        %1212 = vst [vmem:[%s209 + $0xa8] sm:$0xff] %v1187
        %1213 = vst [vmem:[%s209 + $0xb0] sm:$0xff] %v1188
        %1214 = vst [vmem:[%s209 + $0xb8] sm:$0xff] %v1189
        %1215 = vst [vmem:[%s209 + $0xc0] sm:$0xff] %v1190
        %s1216 = sand.u32 %s97, 1
        %s1217 = scalar_lea.sflag [#allocation4], %s1216
        %s1218 = sand.u32 %s97, 1
        %s1219 = smul.addr %s1218, 200
        %s1220 = scalar_lea.vmem [#allocation7], %s1219
        // Predicated region
        $region41: #{tpu_custom_call.1} parent=31 // pred_check
          %p1221 = pneg %p107
        $region42: #{tpu_custom_call.1} parent=31 // pred_check_branch
          %1223 = sbr.rel (%p1221) target = $region44
        $region43: #{tpu_custom_call.1} parent=31 // pred_region
          %s1224 = smul.u32 25, %s21
          %s1225 = ssub.s32 49, %s1224
          %p1226 = scmp.lt.s32.totalorder %s1225, 25
          %s1227 = scalar_select %p1226, %s1225, 25
          %s1228 = smul.u32 128, %s1227
          %s1230 = ssub.s32 3200, %s1228
          %1231 = vsyncadd %s1217, %s1230
          %p1232 = scmp.ne.s32.totalorder 0, %s1228
          %s1233 = smul.addr %s1224, 128
          %s1234 = scalar_lea.hbm %s3, %s1233
          %s1235 = smul.u32 8, %s1227
          %s1236 = sshll.u32 %s1220, 4
          %s1237 = int_to_ptr.vmem [resolvable:$true] %s1236
          %s1238 = sshll.u32 %s1235, 4
          %1242 = dma.vmem_to_hbm [thread:$0]  (%p1232), %s1237, %s1238, %s1234, %s1217, 128, 128, 8
        $region44: #{tpu_custom_call.1} parent=31 // pred_fallthru
          _
      $region32: #{tpu_custom_call.1} parent=5 // pred_fallthru
        _
      %p1243 = scmp.le.s32.totalorder 2, %s16
      // Predicated region
      $region45: #{tpu_custom_call.1} parent=5 // pred_check
        %p1244 = pneg %p1243
      $region46: #{tpu_custom_call.1} parent=5 // pred_check_branch
        %1246 = sbr.rel (%p1244) target = $region48
      $region47: #{tpu_custom_call.1} parent=5 // pred_region
        %s1247 = ssub.s32 %s16, 2
        // Predicated region
        $region49: #{tpu_custom_call.1} parent=47 // pred_check
          %p1248 = pneg %p113
        $region50: #{tpu_custom_call.1} parent=47 // pred_check_branch
          %1250 = sbr.rel (%p1248) target = $region52
        $region51: #{tpu_custom_call.1} parent=47 // pred_region
          %s1251 = sand.u32 %s98, 1
          %s1252 = scalar_lea.sflag [#allocation4], %s1251
          %s1253 = sand.u32 %s98, 1
          %s1254 = smul.addr %s1253, 200
          %s1255 = scalar_lea.vmem [#allocation7], %s1254
          %1256 = dma.done %s1252, 3200
        $region52: #{tpu_custom_call.1} parent=47 // pred_fallthru
          _
      $region48: #{tpu_custom_call.1} parent=5 // pred_fallthru
        _
    $region6: #{tpu_custom_call.1} parent=1 // loop_footer
      %s20 = sadd.s32 1, %s16
    $region7: #{tpu_custom_call.1} parent=1 // loop_footer_branch
      %15 = sbr.rel target = $region3
    $region8: #{tpu_custom_call.1} parent=1 // loop_exit
      _
    %1257 = vsyncpa [#allocation3], 1
    %s1258 = scalar_lea.sflag [#allocation3], 1
    %1259 = vsyncpa %s1258, 1
    %1260 = vsyncpa [#allocation6], 1
    %1261 = vsyncpa [#allocation4], 1
    %s1262 = scalar_lea.sflag [#allocation4], 1
    %1263 = vsyncpa %s1262, 1

</llo_original>
